<compile_context>
chip_gen: v5e
topology: v5e:2x2
jax: 0.10.0
libtpu: 0.0.40
codegen_flags: <defaults>
</compile_context>

<pallas_src>
import jax
import jax.numpy as jnp
from jax.experimental import pallas as pl
from jax.experimental.pallas import tpu as pltpu


def _round_up(a, m):
    return ((a + m - 1) // m) * m


def _outconv_kernel(x_ref, w_ref, b_ref, o_ref):
    # x_ref: (TB, C, TL)  VMEM  input tile (batch-rows x channels x length)
    # w_ref: (C,)         SMEM  conv weight (one scalar per channel)
    # b_ref: (1,)         SMEM  conv bias
    # o_ref: (TB, TL)     VMEM  output tile (sublane/lane-dense)
    C = x_ref.shape[1]
    # Unrolled accumulate over channels into a single (TB, TL) f32 slab.
    # in_ch of a 1x1 output conv is modest, so a static unroll is fine.
    acc = x_ref[:, 0, :].astype(jnp.float32) * w_ref[0]
    for c in range(1, C):
        acc = acc + x_ref[:, c, :].astype(jnp.float32) * w_ref[c]
    acc = acc + b_ref[0]
    o_ref[...] = jnp.tanh(acc).astype(o_ref.dtype)


def out_conv(x, weight, bias, *, tb_max=256, tl_max=None):
    """x: (B, C, L); weight: (1, C, 1); bias: (1,). Returns (B, 1, L)."""
    B, C, L = x.shape
    out_dtype = x.dtype
    in_bytes = jnp.dtype(x.dtype).itemsize
    out_bytes = jnp.dtype(out_dtype).itemsize

    # Sublane multiples for dense VMEM tiles of each dtype.
    sub_in = {4: 8, 2: 16, 1: 32}.get(in_bytes, 8)
    sub_out = {4: 8, 2: 16, 1: 32}.get(out_bytes, 8)
    # The (TB, C, TL) block puts C on the sublane axis -> it is padded.
    c_pad = _round_up(C, sub_in)

    # ---- generation-aware VMEM budget ------------------------------------
    try:
        info = pltpu.get_tpu_info()
        vmem_phys = int(getattr(info, "vmem_capacity_bytes", 0)) or (64 << 20)
    except Exception:  # no hardware query -> assume the smallest (v7x) VMEM
        vmem_phys = 64 << 20
    vmem_limit = min((vmem_phys * 3) // 4, 96 << 20)  # 96 MiB v5e/v6e, 48 MiB v7x
    tile_budget = vmem_limit // 2                     # double-buffered in+out blocks

    # Bytes per (batch-row, lane) column per grid step: padded-C input slab
    # plus one output row, both double buffered, in their real dtypes.
    bytes_per_row_lane = 2 * (c_pad * in_bytes + out_bytes)

    Lp_full = _round_up(L, 128)

    # ---- TL first: minimal dense batch tile, grow length toward full L ----
    TB = sub_out
    tl_cap = (tile_budget // (TB * bytes_per_row_lane)) // 128 * 128
    if tl_max is not None:
        tl_cap = min(tl_cap, max(128, _round_up(tl_max, 128)))
    if tl_cap < 128:
        # Very large C: even one 128-lane column of sub_out batch rows busts
        # the budget; keep the minimal dense tile and widen the scoped limit.
        TL = 128
        need = TB * TL * bytes_per_row_lane + (8 << 20)
        vmem_limit = max(vmem_limit, min(need, vmem_phys - (4 << 20)))
        tile_budget = vmem_limit // 2
    else:
        TL = min(Lp_full, tl_cap)
    Lp = _round_up(Lp_full, TL)

    # ---- then TB: if one step covers the whole length, pack more rows -----
    if TL >= Lp_full and B > TB:
        row_bytes = TL * bytes_per_row_lane
        tb_fit = max(sub_out, (tile_budget // row_bytes) // sub_out * sub_out)
        tb_lim = max(sub_out, (tb_max // sub_out) * sub_out)
        TB = max(sub_out, min(_round_up(B, sub_out), tb_lim, tb_fit))
    Bp = _round_up(B, TB)

    # ---- keep >=2 grid steps for big problems (v7x megacore sharding) -----
    hbm_bytes = B * C * L * in_bytes
    if hbm_bytes >= (8 << 20) and (Bp // TB) * (Lp // TL) < 2:
        if TL > 128:
            TL = max(128, (TL // 2) // 128 * 128)
            Lp = _round_up(Lp_full, TL)
        elif TB > sub_out:
            TB = max(sub_out, (TB // 2) // sub_out * sub_out)
            Bp = _round_up(B, TB)

    # ---- pad, launch, slice ------------------------------------------------
    xp = x
    if Bp != B or Lp != L:
        xp = jnp.pad(x, ((0, Bp - B), (0, 0), (0, Lp - L)))

    w1d = weight.reshape(C).astype(jnp.float32)
    b1d = bias.reshape(1).astype(jnp.float32)

    out2d = pl.pallas_call(
        _outconv_kernel,
        out_shape=jax.ShapeDtypeStruct((Bp, Lp), out_dtype),
        grid_spec=pltpu.PrefetchScalarGridSpec(
            num_scalar_prefetch=0,
            grid=(Bp // TB, Lp // TL),
            in_specs=[
                # (TB, C, TL) input tile; channel axis kept whole (the
                # reduction happens inside the kernel, not across the grid).
                pl.BlockSpec((TB, C, TL), lambda bi, li: (bi, 0, li)),
                # weight + bias live in SMEM: no padded VMEM tiles, no
                # pipeline buffer slots, scalar multiplies broadcast free.
                pl.BlockSpec(memory_space=pltpu.MemorySpace.SMEM),
                pl.BlockSpec(memory_space=pltpu.MemorySpace.SMEM),
            ],
            out_specs=pl.BlockSpec((TB, TL), lambda bi, li: (bi, li)),
        ),
        compiler_params=pltpu.CompilerParams(
            dimension_semantics=("parallel", "parallel"),
            vmem_limit_bytes=int(vmem_limit),
        ),
    )(xp, w1d, b1d)

    return out2d[:B, :L].reshape(B, 1, L)


if __name__ == "__main__":
    B, C, L = 2, 4, 16  # batch, in_ch, sequence length

    key = jax.random.PRNGKey(0)
    kx, kw, kb = jax.random.split(key, 3)

    x = jax.random.normal(kx, (B, C, L), dtype=jnp.float32)
    # nn.Conv1d(in_ch, 1, 1) parameter shapes: weight (1, C, 1), bias (1,)
    weight = jax.random.normal(kw, (1, C, 1), dtype=jnp.float32) * 0.1
    bias = jax.random.normal(kb, (1,), dtype=jnp.float32) * 0.1

    out = jax.block_until_ready(out_conv(x, weight, bias))

    # reference check (plain JAX)
    ref = jnp.tanh(
        jnp.einsum("bcl,c->bl", x, weight.reshape(C)) + bias[0]
    )[:, None, :]
    assert out.shape == (B, 1, L)
    assert jnp.allclose(out, ref, atol=1e-5), "mismatch vs reference"

    print("KERNEL_OK")
</pallas_src>

<mosaic_0001>
module attributes {stable_mosaic.version = 11 : i64} {
  func.func @_outconv_kernel(%arg0: i32, %arg1: i32, %arg2: memref<8x4x128xf32, #tpu.memory_space<vmem>>, %arg3: memref<4xf32, #tpu.memory_space<smem>>, %arg4: memref<1xf32, #tpu.memory_space<smem>>, %arg5: memref<8x128xf32, #tpu.memory_space<vmem>>) attributes {dimension_semantics = [#tpu.dimension_semantics<parallel>, #tpu.dimension_semantics<parallel>], iteration_bounds = array<i64: 1, 1>, scalar_prefetch = 0 : i64, scratch_operands = 0 : i64, tpu.core_type = #tpu.core_type<tc>, window_params = [{transform_indices = @transform_0, window_bounds = array<i64: 8, 4, 128>}, {transform_indices = @transform_1, window_bounds = array<i64: 4>}, {transform_indices = @transform_2, window_bounds = array<i64: 1>}, {transform_indices = @transform_3, window_bounds = array<i64: 8, 128>}]} {
    %c0 = arith.constant 0 : index
    %c0_0 = arith.constant 0 : index
    %c0_1 = arith.constant 0 : index
    %0 = vector.load %arg2[%c0, %c0_0, %c0_1] : memref<8x4x128xf32, #tpu.memory_space<vmem>>, vector<8x1x128xf32>
    %1 = vector.shape_cast %0 : vector<8x1x128xf32> to vector<8x128xf32>
    %c0_2 = arith.constant 0 : index
    %2 = memref.load %arg3[%c0_2] : memref<4xf32, #tpu.memory_space<smem>>
    %3 = vector.broadcast %2 : f32 to vector<8x128xf32>
    %4 = arith.mulf %1, %3 : vector<8x128xf32>
    %c0_3 = arith.constant 0 : index
    %c1 = arith.constant 1 : index
    %c0_4 = arith.constant 0 : index
    %5 = vector.load %arg2[%c0_3, %c1, %c0_4] : memref<8x4x128xf32, #tpu.memory_space<vmem>>, vector<8x1x128xf32>
    %6 = vector.shape_cast %5 : vector<8x1x128xf32> to vector<8x128xf32>
    %c1_5 = arith.constant 1 : index
    %7 = memref.load %arg3[%c1_5] : memref<4xf32, #tpu.memory_space<smem>>
    %8 = vector.broadcast %7 : f32 to vector<8x128xf32>
    %9 = arith.mulf %6, %8 : vector<8x128xf32>
    %10 = arith.addf %4, %9 : vector<8x128xf32>
    %c0_6 = arith.constant 0 : index
    %c2 = arith.constant 2 : index
    %c0_7 = arith.constant 0 : index
    %11 = vector.load %arg2[%c0_6, %c2, %c0_7] : memref<8x4x128xf32, #tpu.memory_space<vmem>>, vector<8x1x128xf32>
    %12 = vector.shape_cast %11 : vector<8x1x128xf32> to vector<8x128xf32>
    %c2_8 = arith.constant 2 : index
    %13 = memref.load %arg3[%c2_8] : memref<4xf32, #tpu.memory_space<smem>>
    %14 = vector.broadcast %13 : f32 to vector<8x128xf32>
    %15 = arith.mulf %12, %14 : vector<8x128xf32>
    %16 = arith.addf %10, %15 : vector<8x128xf32>
    %c0_9 = arith.constant 0 : index
    %c3 = arith.constant 3 : index
    %c0_10 = arith.constant 0 : index
    %17 = vector.load %arg2[%c0_9, %c3, %c0_10] : memref<8x4x128xf32, #tpu.memory_space<vmem>>, vector<8x1x128xf32>
    %18 = vector.shape_cast %17 : vector<8x1x128xf32> to vector<8x128xf32>
    %c3_11 = arith.constant 3 : index
    %19 = memref.load %arg3[%c3_11] : memref<4xf32, #tpu.memory_space<smem>>
    %20 = vector.broadcast %19 : f32 to vector<8x128xf32>
    %21 = arith.mulf %18, %20 : vector<8x128xf32>
    %22 = arith.addf %16, %21 : vector<8x128xf32>
    %c0_12 = arith.constant 0 : index
    %23 = memref.load %arg4[%c0_12] : memref<1xf32, #tpu.memory_space<smem>>
    %24 = vector.broadcast %23 : f32 to vector<8x128xf32>
    %25 = arith.addf %22, %24 : vector<8x128xf32>
    %26 = math.tanh %25 : vector<8x128xf32>
    %c0_13 = arith.constant 0 : index
    %c0_14 = arith.constant 0 : index
    %27 = vector.load %arg5[%c0_13, %c0_14] : memref<8x128xf32, #tpu.memory_space<vmem>>, vector<8x128xf32>
    tpu.vector_store %arg5[%c0_13, %c0_14], %26 {strides = array<i32>} : memref<8x128xf32, #tpu.memory_space<vmem>>, vector<8x128xf32>,
    return
  }
  func.func @transform_0(%arg0: i32, %arg1: i32) -> (i32, i32, i32) {
    %c0_i32 = arith.constant 0 : i32
    %c0_i32_0 = arith.constant 0 : i32
    return %arg0, %c0_i32, %arg1 : i32, i32, i32
  }
  func.func @transform_1(%arg0: i32, %arg1: i32) -> i32 {
    %c0_i32 = arith.constant 0 : i32
    %c0_i32_0 = arith.constant 0 : i32
    return %c0_i32 : i32
  }
  func.func @transform_2(%arg0: i32, %arg1: i32) -> i32 {
    %c0_i32 = arith.constant 0 : i32
    %c0_i32_0 = arith.constant 0 : i32
    return %c0_i32 : i32
  }
  func.func @transform_3(%arg0: i32, %arg1: i32) -> (i32, i32) {
    %c0_i32 = arith.constant 0 : i32
    return %arg0, %arg1 : i32, i32
  }
}

</mosaic_0001>

<llo_original>
// kernel: tpu_custom_call.1
$region0: #{tpu_custom_call.1}
  #allocation0 [shape = 'u32[]', space=smem, size = 0x4, offset = 0x4, fixed_abs, tag = 'smem constant byte address 0x4 - core index']
  #allocation1 [shape = 'u32[72,128]{1,0:T(1,128)}', space=vmem, size = 0x9000, scoped, tag = 'internal scratch']
  #allocation2 [shape = 'f32[1]{0:T(128)S(6)}', space=smem, size = 0x200, scoped, tag = 'scoped memory for tpu_custom_call.1']
  %s0 = inlined_call_operand.hbm [shape: f32[8,4,128], index: 0, kind: input, shape index: {}]
  %s1 = inlined_call_operand.vmem [shape: f32[4], index: 1, kind: input, shape index: {}]
  %s2 = inlined_call_operand.<no memory space> [shape: f32[1], index: 2, kind: input, shape index: {}]
  %s3 = inlined_call_operand.hbm [shape: f32[8,128], index: 3, kind: output, shape index: {}]
  %s4 = sld [smem:[#allocation0]]
  $region30: #{tpu_custom_call.1} parent=0
    _
  %s6 = ssub.s32 1, %s4
  %s7 = scalar_select 0, %s6, %s4
  %8 = sst [smem:[#allocation2]] %s2
  $region1: #{tpu_custom_call.1} parent=0
    #allocation3 [shape = 'u8[16384]{0}', space=vmem, size = 0x4000, scoped, tag = 'input window, operand 0, single buffered']
    #allocation4 [shape = 's32[1]{0}', space=sflag, size = 0x4, scoped, tag = 'scoped memory for tpu_custom_call.1']
    #allocation5 [shape = 's32[1]{0}', space=sflag, size = 0x4, scoped, tag = 'scoped memory for tpu_custom_call.1']
    #allocation6 [shape = 's32[1]{0}', space=sflag, size = 0x4, scoped, tag = 'scoped memory for tpu_custom_call.1']
    #allocation7 [shape = 'u8[512]{0}', space=smem, size = 0x200, scoped, tag = 'input window, operand 1, single buffered']
    #allocation8 [shape = 'u8[4096]{0}', space=vmem, size = 0x1000, scoped, tag = 'output window, operand 0, single buffered']
    %9 = vsyncpa [#allocation4], 0
    %10 = vsyncpa [#allocation6], 0
    %11 = vsyncpa [#allocation5], 0
    // Predicated region
    $region2: #{tpu_custom_call.1} parent=1 // pred_check
      _
    $region3: #{tpu_custom_call.1} parent=1 // pred_check_branch
      %13 = sbr.rel (0) target = $region5
    $region4: #{tpu_custom_call.1} parent=1 // pred_region
      %15 = vsyncadd [#allocation4], 0
      %s16 = sshll.u32 %s0, 4
      %s17 = int_to_ptr.hbm [resolvable:$true] %s16
      %s18 = sshll.u32 [#allocation3], 4
      %s19 = int_to_ptr.vmem [resolvable:$true] %s18
      %24 = dma.hbm_to_vmem [thread:$0]  %s17, 512, %s19, [#allocation4], 64, 64, 4
    $region5: #{tpu_custom_call.1} parent=1 // pred_fallthru
      _
    // Predicated region
    $region6: #{tpu_custom_call.1} parent=1 // pred_check
      _
    $region7: #{tpu_custom_call.1} parent=1 // pred_check_branch
      %26 = sbr.rel (0) target = $region9
    $region8: #{tpu_custom_call.1} parent=1 // pred_region
      %28 = vsyncadd [#allocation6], 0
      %s30 = sshll.u32 %s1, 4
      %s31 = int_to_ptr.vmem [resolvable:$true] %s30
      %33 = dma.vmem_to_smem %s31, 16, [#allocation7], [#allocation6]
    $region9: #{tpu_custom_call.1} parent=1 // pred_fallthru
      _
    // Predicated region
    $region10: #{tpu_custom_call.1} parent=1 // pred_check
      _
    $region11: #{tpu_custom_call.1} parent=1 // pred_check_branch
      %35 = sbr.rel (0) target = $region13
    $region12: #{tpu_custom_call.1} parent=1 // pred_region
      _
    $region13: #{tpu_custom_call.1} parent=1 // pred_fallthru
      _
    // Predicated region
    $region14: #{tpu_custom_call.1} parent=1 // pred_check
      _
    $region15: #{tpu_custom_call.1} parent=1 // pred_check_branch
      %37 = sbr.rel (0) target = $region17
    $region16: #{tpu_custom_call.1} parent=1 // pred_region
      %39 = dma.done [#allocation4], 512
    $region17: #{tpu_custom_call.1} parent=1 // pred_fallthru
      _
    // Predicated region
    $region18: #{tpu_custom_call.1} parent=1 // pred_check
      _
    $region19: #{tpu_custom_call.1} parent=1 // pred_check_branch
      %41 = sbr.rel (0) target = $region21
    $region20: #{tpu_custom_call.1} parent=1 // pred_region
      %43 = dma.done [#allocation6], 16
    $region21: #{tpu_custom_call.1} parent=1 // pred_fallthru
      _
    %44 = sfence
    %v45 = vld [vmem:[#allocation3] sm:$0x1]
    %v46 = vld [vmem:[#allocation3 + $0x4] sm:$0x1]
    %v47 = vld [vmem:[#allocation3 + $0x8] sm:$0x1]
    %v48 = vld [vmem:[#allocation3 + $0xc] sm:$0x1]
    %v49 = vld [vmem:[#allocation3 + $0x10] sm:$0x1]
    %v50 = vld [vmem:[#allocation3 + $0x14] sm:$0x1]
    %v51 = vld [vmem:[#allocation3 + $0x18] sm:$0x1]
    %v52 = vld [vmem:[#allocation3 + $0x1c] sm:$0x1]
    %s53 = sld [smem:[#allocation7]]
    %v54 = vstv %s53
    %v55 = vmul.f32 %v45, %v54
    %v56 = vmul.f32 %v46, %v54
    %v57 = vmul.f32 %v47, %v54
    %v58 = vmul.f32 %v48, %v54
    %v59 = vmul.f32 %v49, %v54
    %v60 = vmul.f32 %v50, %v54
    %v61 = vmul.f32 %v51, %v54
    %v62 = vmul.f32 %v52, %v54
    %v63 = vld [vmem:[#allocation3 + $0x1] sm:$0x1]
    %v64 = vld [vmem:[#allocation3 + $0x5] sm:$0x1]
    %v65 = vld [vmem:[#allocation3 + $0x9] sm:$0x1]
    %v66 = vld [vmem:[#allocation3 + $0xd] sm:$0x1]
    %v67 = vld [vmem:[#allocation3 + $0x11] sm:$0x1]
    %v68 = vld [vmem:[#allocation3 + $0x15] sm:$0x1]
    %v69 = vld [vmem:[#allocation3 + $0x19] sm:$0x1]
    %v70 = vld [vmem:[#allocation3 + $0x1d] sm:$0x1]
    %s71 = sld [smem:[#allocation7 + $0x1]]
    %v72 = vstv %s71
    %v73 = vmul.f32 %v63, %v72
    %v74 = vmul.f32 %v64, %v72
    %v75 = vmul.f32 %v65, %v72
    %v76 = vmul.f32 %v66, %v72
    %v77 = vmul.f32 %v67, %v72
    %v78 = vmul.f32 %v68, %v72
    %v79 = vmul.f32 %v69, %v72
    %v80 = vmul.f32 %v70, %v72
    %v81 = vadd.f32 %v55, %v73
    %v82 = vadd.f32 %v56, %v74
    %v83 = vadd.f32 %v57, %v75
    %v84 = vadd.f32 %v58, %v76
    %v85 = vadd.f32 %v59, %v77
    %v86 = vadd.f32 %v60, %v78
    %v87 = vadd.f32 %v61, %v79
    %v88 = vadd.f32 %v62, %v80
    %v89 = vld [vmem:[#allocation3 + $0x2] sm:$0x1]
    %v90 = vld [vmem:[#allocation3 + $0x6] sm:$0x1]
    %v91 = vld [vmem:[#allocation3 + $0xa] sm:$0x1]
    %v92 = vld [vmem:[#allocation3 + $0xe] sm:$0x1]
    %v93 = vld [vmem:[#allocation3 + $0x12] sm:$0x1]
    %v94 = vld [vmem:[#allocation3 + $0x16] sm:$0x1]
    %v95 = vld [vmem:[#allocation3 + $0x1a] sm:$0x1]
    %v96 = vld [vmem:[#allocation3 + $0x1e] sm:$0x1]
    %s97 = sld [smem:[#allocation7 + $0x2]]
    %v98 = vstv %s97
    %v99 = vmul.f32 %v89, %v98
    %v100 = vmul.f32 %v90, %v98
    %v101 = vmul.f32 %v91, %v98
    %v102 = vmul.f32 %v92, %v98
    %v103 = vmul.f32 %v93, %v98
    %v104 = vmul.f32 %v94, %v98
    %v105 = vmul.f32 %v95, %v98
    %v106 = vmul.f32 %v96, %v98
    %v107 = vadd.f32 %v81, %v99
    %v108 = vadd.f32 %v82, %v100
    %v109 = vadd.f32 %v83, %v101
    %v110 = vadd.f32 %v84, %v102
    %v111 = vadd.f32 %v85, %v103
    %v112 = vadd.f32 %v86, %v104
    %v113 = vadd.f32 %v87, %v105
    %v114 = vadd.f32 %v88, %v106
    %v115 = vld [vmem:[#allocation3 + $0x3] sm:$0x1]
    %v116 = vld [vmem:[#allocation3 + $0x7] sm:$0x1]
    %v117 = vld [vmem:[#allocation3 + $0xb] sm:$0x1]
    %v118 = vld [vmem:[#allocation3 + $0xf] sm:$0x1]
    %v119 = vld [vmem:[#allocation3 + $0x13] sm:$0x1]
    %v120 = vld [vmem:[#allocation3 + $0x17] sm:$0x1]
    %v121 = vld [vmem:[#allocation3 + $0x1b] sm:$0x1]
    %v122 = vld [vmem:[#allocation3 + $0x1f] sm:$0x1]
    %s123 = sld [smem:[#allocation7 + $0x3]]
    %v124 = vstv %s123
    %v125 = vmul.f32 %v115, %v124
    %v126 = vmul.f32 %v116, %v124
    %v127 = vmul.f32 %v117, %v124
    %v128 = vmul.f32 %v118, %v124
    %v129 = vmul.f32 %v119, %v124
    %v130 = vmul.f32 %v120, %v124
    %v131 = vmul.f32 %v121, %v124
    %v132 = vmul.f32 %v122, %v124
    %v133 = vadd.f32 %v107, %v125
    %v134 = vadd.f32 %v108, %v126
    %v135 = vadd.f32 %v109, %v127
    %v136 = vadd.f32 %v110, %v128
    %v137 = vadd.f32 %v111, %v129
    %v138 = vadd.f32 %v112, %v130
    %v139 = vadd.f32 %v113, %v131
    %v140 = vadd.f32 %v114, %v132
    %s141 = sld [smem:[#allocation2]]
    %v142 = vstv %s141
    %v143 = vadd.f32 %v133, %v142
    %v144 = vadd.f32 %v134, %v142
    %v145 = vadd.f32 %v135, %v142
    %v146 = vadd.f32 %v136, %v142
    %v147 = vadd.f32 %v137, %v142
    %v148 = vadd.f32 %v138, %v142
    %v149 = vadd.f32 %v139, %v142
    %v150 = vadd.f32 %v140, %v142
    %v151 = vtanh.pop %v143
    %v152 = vtanh.pop %v144
    %v153 = vtanh.pop %v145
    %v154 = vtanh.pop %v146
    %v155 = vtanh.pop %v147
    %v156 = vtanh.pop %v148
    %v157 = vtanh.pop %v149
    %v158 = vtanh.pop %v150
    %v167 = vrot.slane %v152, 7
    %vm168 = vcmask 1041409
    %v169 = vsel %vm168, %v167, %v151
    %v170 = vrot.slane %v153, 6
    %vm171 = vcmask 1042434
    %v172 = vsel %vm171, %v170, %v169
    %v173 = vrot.slane %v154, 5
    %vm174 = vcmask 1043459
    %v175 = vsel %vm174, %v173, %v172
    %v176 = vrot.slane %v155, 4
    %vm177 = vcmask 1044484
    %v178 = vsel %vm177, %v176, %v175
    %v179 = vrot.slane %v156, 3
    %vm180 = vcmask 1045509
    %v181 = vsel %vm180, %v179, %v178
    %v182 = vrot.slane %v157, 2
    %vm183 = vcmask 1046534
    %v184 = vsel %vm183, %v182, %v181
    %v185 = vrot.slane %v158, 1
    %vm186 = vcmask 1047559
    %v187 = vsel %vm186, %v185, %v184
    %189 = vst [vmem:[#allocation8] sm:$0xff] %v187
    // Predicated region
    $region22: #{tpu_custom_call.1} parent=1 // pred_check
      _
    $region23: #{tpu_custom_call.1} parent=1 // pred_check_branch
      %191 = sbr.rel (0) target = $region25
    $region24: #{tpu_custom_call.1} parent=1 // pred_region
      %193 = vsyncadd [#allocation5], 0
      %s195 = sshll.u32 [#allocation8], 4
      %s196 = int_to_ptr.vmem [resolvable:$true] %s195
      %s197 = sshll.u32 %s3, 4
      %s198 = int_to_ptr.hbm [resolvable:$true] %s197
      %200 = dma.vmem_to_hbm [thread:$0]  %s196, 128, %s198, [#allocation5]
    $region25: #{tpu_custom_call.1} parent=1 // pred_fallthru
      _
    // Predicated region
    $region26: #{tpu_custom_call.1} parent=1 // pred_check
      _
    $region27: #{tpu_custom_call.1} parent=1 // pred_check_branch
      %202 = sbr.rel (0) target = $region29
    $region28: #{tpu_custom_call.1} parent=1 // pred_region
      %204 = dma.done [#allocation5], 128
    $region29: #{tpu_custom_call.1} parent=1 // pred_fallthru
      _
    %205 = vsyncpa [#allocation4], 1
    %206 = vsyncpa [#allocation5], 1
    %207 = vsyncpa [#allocation6], 1

</llo_original>
